<compile_context>
chip_gen: v5e
topology: v5e:2x2
jax: 0.10.0
libtpu: 0.0.40
codegen_flags: <defaults>
</compile_context>

<pallas_src>
import functools

import jax
import jax.numpy as jnp
from jax.experimental import pallas as pl
from jax.experimental.pallas import tpu as pltpu


def _segment_sum_kernel(B, x_ref, batch_ref, out_ref):
    """One grid step: out[c] += onehot(batch_tile) @ x_tile  (MXU).

    x_ref:     [TN, H]  f32 node-feature tile (pipelined, double-buffered)
    batch_ref: [1, TN]  int32 graph id per node (padded tail carries sentinel B)
    out_ref:   [1, B, H] f32 per-core partial accumulator (resident across k)
    """
    k = pl.program_id(1)

    @pl.when(k == 0)
    def _init():
        out_ref[...] = jnp.zeros_like(out_ref)

    x = x_ref[...]                                               # [TN, H]
    batch = batch_ref[...]                                       # [1, TN]
    seg = jax.lax.broadcasted_iota(jnp.int32, (B, x.shape[0]), 0)
    # Sentinel id B in padded columns never matches seg in [0, B) -> zero cols.
    onehot = (seg == batch).astype(x.dtype)                      # [B, TN]
    out_ref[0] = out_ref[0] + jnp.dot(onehot, x,
                                      preferred_element_type=jnp.float32)


@functools.lru_cache(maxsize=None)
def _vmem_limit_bytes():
    try:
        cap = int(getattr(pltpu.get_tpu_info(), "vmem_capacity_bytes",
                          64 * 1024 * 1024))
    except Exception:
        cap = 64 * 1024 * 1024
    # ~75% of physical VMEM: <=48 MiB on v7x (64 MiB), 96-100 MiB on v5e/v6e.
    return min(int(cap * 0.75), 100 * 1024 * 1024)


def _pick_node_tile(H, B, max_node_tile=None):
    """Byte-sized node tile: ~4 MiB for the x block AND for the [B,TN] one-hot."""
    target = 4 * 1024 * 1024
    tn = min(target // (4 * H), target // (4 * max(B, 1)))
    tn = max(128, (tn // 128) * 128)
    tn = min(tn, 8192)
    if max_node_tile is not None:
        tn = min(tn, max(128, (max_node_tile // 128) * 128))
    return tn


def _segment_sum_pallas(x, batch, num_segments, max_node_tile=None):
    """scatter_sum(x, batch, dim=0) -> [B, H] via a Pallas streaming kernel."""
    N, H = x.shape
    B = num_segments
    TN = _pick_node_tile(H, B, max_node_tile)

    if N <= TN:
        # Single full-extent tile: no padding, no tiling, one core.
        NC, tiles_per_core, TN, N_pad = 1, 1, N, N
    else:
        NC = 2                                   # v7x megacore split over N
        tiles_per_core = -(-N // (NC * TN))
        N_pad = NC * tiles_per_core * TN

    if N_pad > N:
        pad = N_pad - N
        x = jnp.pad(x, ((0, pad), (0, 0)))                     # zero rows
        batch = jnp.pad(batch, (0, pad), constant_values=B)    # sentinel id
    batch2d = batch.astype(jnp.int32).reshape(1, N_pad)

    grid_spec = pltpu.PrefetchScalarGridSpec(
        num_scalar_prefetch=0,
        grid=(NC, tiles_per_core),
        in_specs=[
            pl.BlockSpec((TN, H), lambda c, k: (c * tiles_per_core + k, 0)),
            pl.BlockSpec((1, TN), lambda c, k: (0, c * tiles_per_core + k)),
        ],
        out_specs=pl.BlockSpec((1, B, H), lambda c, k: (c, 0, 0)),
    )

    partial = pl.pallas_call(
        functools.partial(_segment_sum_kernel, B),
        out_shape=jax.ShapeDtypeStruct((NC, B, H), jnp.float32),
        grid_spec=grid_spec,
        compiler_params=pltpu.CompilerParams(
            dimension_semantics=("parallel", "arbitrary"),
            vmem_limit_bytes=_vmem_limit_bytes(),
        ),
    )(x, batch2d)
    return partial.sum(axis=0)                                  # [B, H]


@functools.partial(jax.jit, static_argnames=("max_node_tile",))
def decoder_forward(x, glob, batch, weight, bias, *, max_node_tile=None):
    """x: [N,H] f32, glob: [B,H] f32, batch: [N] int32,
    weight: [H, 2H] f32 (PyTorch Linear layout), bias: [H] f32."""
    B = glob.shape[0]
    agg = _segment_sum_pallas(x.astype(jnp.float32), batch, B, max_node_tile)
    # Tiny [B,2H]@[2H,H] epilogue: leave it to XLA (keeps weights out of the
    # streaming kernel's VMEM, matters most on v7x).
    cat = jnp.concatenate([glob, agg.astype(glob.dtype)], axis=1)
    return cat @ weight.T + bias


def decoder_reference(x, glob, batch, weight, bias):
    B = glob.shape[0]
    agg = jax.ops.segment_sum(x, batch, num_segments=B)
    cat = jnp.concatenate([glob, agg], axis=1)
    return cat @ weight.T + bias


def _run_case(key, num_nodes, num_graphs, n_hidden, max_node_tile=None):
    k_x, k_g, k_b, k_w, k_bias = jax.random.split(key, 5)
    x = jax.random.normal(k_x, (num_nodes, n_hidden), dtype=jnp.float32)
    glob = jax.random.normal(k_g, (num_graphs, n_hidden), dtype=jnp.float32)
    batch = jax.random.randint(k_b, (num_nodes,), 0, num_graphs, dtype=jnp.int32)
    weight = jax.random.normal(k_w, (n_hidden, 2 * n_hidden), dtype=jnp.float32) * 0.1
    bias = jax.random.normal(k_bias, (n_hidden,), dtype=jnp.float32) * 0.1

    out = decoder_forward(x, glob, batch, weight, bias, max_node_tile=max_node_tile)
    out = jax.block_until_ready(out)

    ref = decoder_reference(x, glob, batch, weight, bias)
    assert out.shape == (num_graphs, n_hidden)
    assert jnp.allclose(out, ref, atol=1e-4, rtol=1e-4), "mismatch vs reference"


if __name__ == "__main__":
    key = jax.random.PRNGKey(0)
    k1, k2 = jax.random.split(key)

    # Small shapes implied by the module: B=2 graphs, N=8 nodes, H=32 hidden.
    _run_case(k1, num_nodes=8, num_graphs=2, n_hidden=32)

    # Exercise the tiled / padded / megacore-parallel reduction path
    # (N=300 not a tile multiple; force TN=128 so multiple grid steps run).
    _run_case(k2, num_nodes=300, num_graphs=4, n_hidden=32, max_node_tile=128)

    print("KERNEL_OK")
</pallas_src>

<mosaic_0001>
module attributes {stable_mosaic.version = 11 : i64} {
  func.func @_segment_sum_kernel(%arg0: i32, %arg1: i32, %arg2: memref<8x32xf32, #tpu.memory_space<vmem>>, %arg3: memref<1x8xi32, #tpu.memory_space<vmem>>, %arg4: memref<1x2x32xf32, #tpu.memory_space<vmem>>) attributes {dimension_semantics = [#tpu.dimension_semantics<parallel>, #tpu.dimension_semantics<arbitrary>], iteration_bounds = array<i64: 1, 1>, scalar_prefetch = 0 : i64, scratch_operands = 0 : i64, tpu.core_type = #tpu.core_type<tc>, window_params = [{transform_indices = @transform_0, window_bounds = array<i64: 8, 32>}, {transform_indices = @transform_1, window_bounds = array<i64: 1, 8>}, {transform_indices = @transform_2, window_bounds = array<i64: 1, 2, 32>}]} {
    %c0_i32 = arith.constant 0 : i32
    %0 = arith.cmpi eq, %arg1, %c0_i32 : i32
    %1 = arith.extui %0 : i1 to i32
    %c0_i32_0 = arith.constant 0 : i32
    %2 = arith.cmpi ne, %1, %c0_i32_0 : i32
    scf.if %2 {
      %cst_10 = arith.constant 0.000000e+00 : f32
      %17 = vector.broadcast %cst_10 : f32 to vector<1x2x32xf32>
      %c0_11 = arith.constant 0 : index
      %c0_12 = arith.constant 0 : index
      %c0_13 = arith.constant 0 : index
      %18 = vector.load %arg4[%c0_11, %c0_12, %c0_13] : memref<1x2x32xf32, #tpu.memory_space<vmem>>, vector<1x2x32xf32>
      tpu.vector_store %arg4[%c0_11, %c0_12, %c0_13], %17 {strides = array<i32>} : memref<1x2x32xf32, #tpu.memory_space<vmem>>, vector<1x2x32xf32>,
    } else {
    }
    %c0 = arith.constant 0 : index
    %c0_1 = arith.constant 0 : index
    %3 = vector.load %arg2[%c0, %c0_1] : memref<8x32xf32, #tpu.memory_space<vmem>>, vector<8x32xf32>
    %c0_2 = arith.constant 0 : index
    %c0_3 = arith.constant 0 : index
    %4 = vector.load %arg3[%c0_2, %c0_3] : memref<1x8xi32, #tpu.memory_space<vmem>>, vector<1x8xi32>
    %5 = tpu.iota {dimensions = array<i32: 0>} : vector<2x8xi32>
    %6 = vector.broadcast %4 : vector<1x8xi32> to vector<2x8xi32>
    %7 = arith.cmpi eq, %5, %6 : vector<2x8xi32>
    %8 = arith.extui %7 : vector<2x8xi1> to vector<2x8xi32>
    %9 = arith.sitofp %8 : vector<2x8xi32> to vector<2x8xf32>
    %c0_4 = arith.constant 0 : index
    %c0_5 = arith.constant 0 : index
    %c0_6 = arith.constant 0 : index
    %10 = vector.load %arg4[%c0_4, %c0_5, %c0_6] : memref<1x2x32xf32, #tpu.memory_space<vmem>>, vector<1x2x32xf32>
    %11 = vector.shape_cast %10 : vector<1x2x32xf32> to vector<2x32xf32>
    %cst = arith.constant dense<0.000000e+00> : vector<2x32xf32>
    %12 = tpu.matmul %9, %3, %cst {dimension_numbers = #tpu.dot_dimension_numbers<[1], [0], [0], [1], [0, 0, 1, 1], [], []>} : vector<2x8xf32>, vector<8x32xf32>, vector<2x32xf32> -> vector<2x32xf32>
    %13 = arith.addf %11, %12 : vector<2x32xf32>
    %c0_7 = arith.constant 0 : index
    %c0_8 = arith.constant 0 : index
    %c0_9 = arith.constant 0 : index
    %14 = vector.load %arg4[%c0_7, %c0_8, %c0_9] : memref<1x2x32xf32, #tpu.memory_space<vmem>>, vector<1x2x32xf32>
    %15 = vector.shape_cast %14 : vector<1x2x32xf32> to vector<2x32xf32>
    %16 = vector.shape_cast %13 : vector<2x32xf32> to vector<1x2x32xf32>
    tpu.vector_store %arg4[%c0_7, %c0_8, %c0_9], %16 {strides = array<i32>} : memref<1x2x32xf32, #tpu.memory_space<vmem>>, vector<1x2x32xf32>,
    return
  }
  func.func @transform_0(%arg0: i32, %arg1: i32) -> (i32, i32) {
    %c1_i32 = arith.constant 1 : i32
    %0 = arith.muli %arg0, %c1_i32 : i32
    %1 = arith.addi %0, %arg1 : i32
    %c0_i32 = arith.constant 0 : i32
    %c0_i32_0 = arith.constant 0 : i32
    return %1, %c0_i32 : i32, i32
  }
  func.func @transform_1(%arg0: i32, %arg1: i32) -> (i32, i32) {
    %c1_i32 = arith.constant 1 : i32
    %0 = arith.muli %arg0, %c1_i32 : i32
    %1 = arith.addi %0, %arg1 : i32
    %c0_i32 = arith.constant 0 : i32
    %c0_i32_0 = arith.constant 0 : i32
    return %c0_i32, %1 : i32, i32
  }
  func.func @transform_2(%arg0: i32, %arg1: i32) -> (i32, i32, i32) {
    %c0_i32 = arith.constant 0 : i32
    %c0_i32_0 = arith.constant 0 : i32
    %c0_i32_1 = arith.constant 0 : i32
    return %arg0, %c0_i32, %c0_i32_0 : i32, i32, i32
  }
}

</mosaic_0001>

<llo_original>
// kernel: decoder_forward.1
$region0: #{decoder_forward.1}
  #allocation0 [shape = 'u32[]', space=smem, size = 0x4, offset = 0x4, fixed_abs, tag = 'smem constant byte address 0x4 - core index']
  #allocation1 [shape = 'u32[72,128]{1,0:T(1,128)}', space=vmem, size = 0x9000, scoped, tag = 'internal scratch']
  %s0 = inlined_call_operand.hbm [shape: f32[8,32], index: 0, kind: input, shape index: {}]
  %s1 = inlined_call_operand.vmem [shape: s32[1,8], index: 1, kind: input, shape index: {}]
  %s2 = inlined_call_operand.vmem [shape: f32[1,2,32], index: 2, kind: output, shape index: {}]
  %s3 = sld [smem:[#allocation0]]
  $region26: #{decoder_forward.1} parent=0
    _
  %s5 = ssub.s32 1, %s3
  %s6 = scalar_select 0, %s5, %s3
  $region1: #{decoder_forward.1} parent=0
    #allocation2 [shape = 'u8[4096]{0}', space=vmem, size = 0x1000, scoped, tag = 'input window, operand 0, single buffered']
    #allocation3 [shape = 's32[1]{0}', space=sflag, size = 0x4, scoped, tag = 'scoped memory for decoder_forward.1']
    %7 = vsyncpa [#allocation3], 0
    // Predicated region
    $region2: #{decoder_forward.1} parent=1 // pred_check
      _
    $region3: #{decoder_forward.1} parent=1 // pred_check_branch
      %9 = sbr.rel (0) target = $region5
    $region4: #{decoder_forward.1} parent=1 // pred_region
      %s10 = sadd.s32 0, 0
      %12 = vsyncadd [#allocation3], 0
      %s13 = smul.addr %s10, 8
      %s14 = scalar_lea.hbm %s0, %s13
      %s16 = sshll.u32 %s14, 4
      %s17 = int_to_ptr.hbm [resolvable:$true] %s16
      %s18 = sshll.u32 [#allocation2], 4
      %s19 = int_to_ptr.vmem [resolvable:$true] %s18
      %21 = dma.hbm_to_vmem [thread:$0]  %s17, 128, %s19, [#allocation3]
    $region5: #{decoder_forward.1} parent=1 // pred_fallthru
      _
    // Predicated region
    $region6: #{decoder_forward.1} parent=1 // pred_check
      _
    $region7: #{decoder_forward.1} parent=1 // pred_check_branch
      %23 = sbr.rel (0) target = $region9
    $region8: #{decoder_forward.1} parent=1 // pred_region
      %s24 = sadd.s32 0, 0
      %p25 = scmp.lt.s32.totalorder %s24, 0
      %s26 = scalar_select %p25, %s24, 0
      %s27 = scalar_lea.vmem %s1, %s26
      %s28 = sadd.s32 0, 0
    $region9: #{decoder_forward.1} parent=1 // pred_fallthru
      _
    // Predicated region
    $region10: #{decoder_forward.1} parent=1 // pred_check
      _
    $region11: #{decoder_forward.1} parent=1 // pred_check_branch
      %30 = sbr.rel (0) target = $region13
    $region12: #{decoder_forward.1} parent=1 // pred_region
      %32 = dma.done [#allocation3], 128
    $region13: #{decoder_forward.1} parent=1 // pred_fallthru
      _
    %s33 = sadd.s32 0, 0
    %p34 = scmp.lt.s32.totalorder %s33, 0
    %s35 = scalar_select %p34, %s33, 0
    %s36 = scalar_lea.vmem %s1, %s35
    %s37 = sadd.s32 0, 0
    %s38 = sadd.s32 0, 0
    %p39 = scmp.lt.s32.totalorder %s38, 0
    %s40 = scalar_select %p39, %s38, 0
    %s41 = scalar_lea.vmem %s1, %s40
    %s42 = sadd.s32 0, 0
    %p43 = scmp.eq.s32.totalorder 0, 0
    // Predicated region
    $region14: #{decoder_forward.1} parent=1 // pred_check
      %p44 = pneg %p43
    $region15: #{decoder_forward.1} parent=1 // pred_check_branch
      %46 = sbr.rel (%p44) target = $region17
    $region16: #{decoder_forward.1} parent=1 // pred_region
      %vm47 = vcmask 254976
      %48 = vst.msk [vmem:[%s2] sm:$0x3] %vm47, 0.0
    $region17: #{decoder_forward.1} parent=1 // pred_fallthru
      _
    %v49 = vld [vmem:[#allocation2] sm:$0xff]
    %v50 = vld [vmem:[%s41] sm:$0x1]
    %v51 = vlaneseq
    %v52 = vshrl.u32 %v51, 7
    %v53 = vperm.slane %v50, 0
    %vm54 = vcmp.eq.s32.totalorder %v52, %v53
    %v55 = vsel %vm54, 1, 0
    %v56 = vcvt.s32.f32 %v55
    %v57 = vld [vmem:[%s2] sm:$0x3]
    %vm58 = vcmask 64512
    %v60 = vsel %vm58, %v56, 0
    %62 = vmatpush.msra.mxu0 0.0
    %63 = vmatpush.msra.mxu0 0.0
    %64 = vmatpush.msra.mxu0 0.0
    %65 = vmatpush.msra.mxu0 0.0
    %66 = vmatpush.msra.mxu0 0.0
    %67 = vmatpush.msra.mxu0 0.0
    %68 = vmatpush.msra.mxu0 0.0
    %69 = vmatpush.msra.mxu0 0.0
    %70 = vmatpush.msra.mxu0 0.0
    %71 = vmatpush.msra.mxu0 0.0
    %72 = vmatpush.msra.mxu0 0.0
    %73 = vmatpush.msra.mxu0 0.0
    %74 = vmatpush.msra.mxu0 0.0
    %75 = vmatpush.msra.mxu0 0.0
    %76 = vmatpush.msra.mxu0 0.0
    %77 = vmatpush.msra.mxu0 %v49
    %78 = vmatmul.f32.gmra.mxu0 %v60
    %v79 = vpop.f32.mrf.mxu0
    %v80 = vadd.f32 0.0, %v79
    %81 = vdwg.mxu0
    %v82 = vadd.f32 %v57, %v80
    %vm83 = vcmask 254976
    %84 = vst.msk [vmem:[%s2] sm:$0x3] %vm83, %v82
    // Predicated region
    $region18: #{decoder_forward.1} parent=1 // pred_check
      _
    $region19: #{decoder_forward.1} parent=1 // pred_check_branch
      %86 = sbr.rel (0) target = $region21
    $region20: #{decoder_forward.1} parent=1 // pred_region
      _
    $region21: #{decoder_forward.1} parent=1 // pred_fallthru
      _
    // Predicated region
    $region22: #{decoder_forward.1} parent=1 // pred_check
      _
    $region23: #{decoder_forward.1} parent=1 // pred_check_branch
      %88 = sbr.rel (0) target = $region25
    $region24: #{decoder_forward.1} parent=1 // pred_region
      _
    $region25: #{decoder_forward.1} parent=1 // pred_fallthru
      _
    %89 = vsyncpa [#allocation3], 1

</llo_original>
